<compile_context>
chip_gen: v7x
topology: tpu7x:2x2x1
jax: 0.10.0
libtpu: 0.0.40
codegen_flags: <defaults>
</compile_context>

<pallas_src>
import math
import functools

import jax
import jax.numpy as jnp
from jax import lax
from jax.experimental import pallas as pl
from jax.experimental.pallas import tpu as pltpu

FRAME = 8        # synthetic feature-extractor frame size / stride
BATCH_TILE = 8   # sublane-full batch tile for the LSTM / projection kernels
CHUNK_T = 64     # time-chunk streamed through the recurrence / projection


def _round_up(x, m):
    return ((x + m - 1) // m) * m


# --------------------------- synthetic featurizer ----------------------------
def _featurizer_kernel(frames_ref, wc_ref, bc_ref, wp_ref, bp_ref, out_ref):
    x = frames_ref[...]                                        # (tile_t, FRAME) bf16
    y = jnp.dot(x, wc_ref[...], preferred_element_type=jnp.float32) + bc_ref[...]
    y = jax.nn.gelu(y, approximate=True)
    z = (jnp.dot(y.astype(jnp.bfloat16), wp_ref[...],
                 preferred_element_type=jnp.float32) + bp_ref[...])
    out_ref[...] = z.astype(out_ref.dtype)


def featurize(wav, feat_params):
    """(B, L) raw waveform -> (B, T, D) bf16 features (synthetic wav2vec stand-in)."""
    B, L = wav.shape
    T = L // FRAME
    D = feat_params["wp"].shape[1]
    frames = wav[:, : T * FRAME].reshape(B, T, FRAME).astype(jnp.bfloat16)
    tile_t = T if T <= 1024 else 1024
    grid = (B, pl.cdiv(T, tile_t))
    return pl.pallas_call(
        _featurizer_kernel,
        out_shape=jax.ShapeDtypeStruct((B, T, D), jnp.bfloat16),
        grid=grid,
        in_specs=[
            pl.BlockSpec((None, tile_t, FRAME), lambda b, t: (b, t, 0)),
            pl.BlockSpec((FRAME, D), lambda b, t: (0, 0)),
            pl.BlockSpec((1, D), lambda b, t: (0, 0)),
            pl.BlockSpec((D, D), lambda b, t: (0, 0)),
            pl.BlockSpec((1, D), lambda b, t: (0, 0)),
        ],
        out_specs=pl.BlockSpec((None, tile_t, D), lambda b, t: (b, t, 0)),
        compiler_params=pltpu.CompilerParams(
            dimension_semantics=("parallel", "parallel"),
            vmem_limit_bytes=32 * 1024 * 1024),
    )(frames, feat_params["wc"], feat_params["bc"],
      feat_params["wp"], feat_params["bp"])


# --------------------------- bi-LSTM recurrence -------------------------------
def _lstm_recurrence_kernel(len_ref, xf_ref, xb_ref,
                            wih_f_ref, wih_b_ref, b_f_ref, b_b_ref,
                            whh_f_ref, whh_b_ref,
                            hf_out_ref, hb_out_ref,
                            xg_f_s, xg_b_s, h_s, c_s, *, n_chunks):
    ct, bt, _ = xf_ref.shape
    H = whh_f_ref.shape[0]
    c_idx = pl.program_id(1)

    @pl.when(c_idx == 0)
    def _():
        h_s[...] = jnp.zeros_like(h_s)
        c_s[...] = jnp.zeros_like(c_s)

    # ---- per-chunk input projection (big MXU matmul, bf16 scratch) ----
    dn = (((2,), (0,)), ((), ()))
    xg_f_s[...] = (lax.dot_general(xf_ref[...], wih_f_ref[...], dn,
                                   preferred_element_type=jnp.float32)
                   + b_f_ref[...]).astype(xg_f_s.dtype)
    xg_b_s[...] = (lax.dot_general(xb_ref[...], wih_b_ref[...], dn,
                                   preferred_element_type=jnp.float32)
                   + b_b_ref[...]).astype(xg_b_s.dtype)

    len_v = len_ref[...]                                       # (bt, 1) int32
    len2 = jnp.concatenate([len_v, len_v], axis=0)             # (2bt, 1)
    t0_f = c_idx * ct                                          # fwd chunk start
    t0_b = (n_chunks - 1 - c_idx) * ct                         # bwd chunk start
    t_base = jnp.concatenate(
        [jnp.full((bt, 1), t0_f, jnp.int32),
         jnp.full((bt, 1), t0_b + ct - 1, jnp.int32)], axis=0)  # (2bt, 1)
    t_sign = jnp.concatenate(
        [jnp.ones((bt, 1), jnp.int32), -jnp.ones((bt, 1), jnp.int32)], axis=0)

    def step(j, carry):
        h_all = h_s[...]                                       # (2bt, H) f32
        c_all = c_s[...]
        hf = h_all[:bt]
        hb = h_all[bt:]
        jb = ct - 1 - j

        gf = xg_f_s[j].astype(jnp.float32) + jnp.dot(
            hf.astype(jnp.bfloat16), whh_f_ref[...],
            preferred_element_type=jnp.float32)
        gb = xg_b_s[jb].astype(jnp.float32) + jnp.dot(
            hb.astype(jnp.bfloat16), whh_b_ref[...],
            preferred_element_type=jnp.float32)

        # batched gate math for both directions (PyTorch order i, f, g, o)
        g = jnp.concatenate([gf, gb], axis=0)                  # (2bt, 4H)
        i_g = jax.nn.sigmoid(g[:, 0:H])
        f_g = jax.nn.sigmoid(g[:, H:2 * H])
        g_g = jnp.tanh(g[:, 2 * H:3 * H])
        o_g = jax.nn.sigmoid(g[:, 3 * H:4 * H])
        c_new = f_g * c_all + i_g * g_g
        h_new = o_g * jnp.tanh(c_new)

        act = (t_base + j * t_sign) < len2                     # (2bt, 1)
        h_out = jnp.where(act, h_new, 0.0)
        hf_out_ref[j] = h_out[:bt].astype(hf_out_ref.dtype)
        hb_out_ref[jb] = h_out[bt:].astype(hb_out_ref.dtype)
        h_s[...] = jnp.where(act, h_new, h_all)
        c_s[...] = jnp.where(act, c_new, c_all)
        return carry

    lax.fori_loop(0, ct, step, 0, unroll=2)


def lstm_recurrence(x_tm, len_vec, p, *, ct):
    """x_tm: (T_pad, B_pad, D) bf16 time-major. Returns bf16 (T_pad,B_pad,H) x2."""
    T_pad, B_pad, D = x_tm.shape
    H = p["whh_f"].shape[0]
    bt = BATCH_TILE
    n_chunks = T_pad // ct
    grid = (B_pad // bt, n_chunks)
    kernel = functools.partial(_lstm_recurrence_kernel, n_chunks=n_chunks)
    return pl.pallas_call(
        kernel,
        out_shape=(jax.ShapeDtypeStruct((T_pad, B_pad, H), jnp.bfloat16),
                   jax.ShapeDtypeStruct((T_pad, B_pad, H), jnp.bfloat16)),
        grid=grid,
        in_specs=[
            pl.BlockSpec((bt, 1), lambda b, c: (b, 0)),                        # lengths
            pl.BlockSpec((ct, bt, D), lambda b, c: (c, b, 0)),                 # x fwd
            pl.BlockSpec((ct, bt, D), lambda b, c: (n_chunks - 1 - c, b, 0)),  # x bwd
            pl.BlockSpec((D, 4 * H), lambda b, c: (0, 0)),
            pl.BlockSpec((D, 4 * H), lambda b, c: (0, 0)),
            pl.BlockSpec((1, 4 * H), lambda b, c: (0, 0)),
            pl.BlockSpec((1, 4 * H), lambda b, c: (0, 0)),
            pl.BlockSpec((H, 4 * H), lambda b, c: (0, 0)),
            pl.BlockSpec((H, 4 * H), lambda b, c: (0, 0)),
        ],
        out_specs=(pl.BlockSpec((ct, bt, H), lambda b, c: (c, b, 0)),
                   pl.BlockSpec((ct, bt, H), lambda b, c: (n_chunks - 1 - c, b, 0))),
        scratch_shapes=[pltpu.VMEM((ct, bt, 4 * H), jnp.bfloat16),
                        pltpu.VMEM((ct, bt, 4 * H), jnp.bfloat16),
                        pltpu.VMEM((2 * bt, H), jnp.float32),
                        pltpu.VMEM((2 * bt, H), jnp.float32)],
        compiler_params=pltpu.CompilerParams(
            dimension_semantics=("parallel", "arbitrary"),
            vmem_limit_bytes=64 * 1024 * 1024),
    )(len_vec, x_tm, x_tm, p["wih_f"], p["wih_b"], p["b_f"], p["b_b"],
      p["whh_f"], p["whh_b"])


# -------------- output Linear + fused LangDiscriminator confidence -----------
def _proj_conf_kernel(hf_ref, hb_ref, wf_ref, wb_ref, bout_ref,
                      out_ref, conf_ref, csum_s, cnt_s,
                      *, blank_id, v1, log_vocab, t_orig):
    ct, bt, _ = hf_ref.shape
    c = pl.program_id(1)

    @pl.when(c == 0)
    def _():
        csum_s[...] = jnp.zeros_like(csum_s)
        cnt_s[...] = jnp.zeros_like(cnt_s)

    dn = (((2,), (0,)), ((), ()))
    logits = (lax.dot_general(hf_ref[...], wf_ref[...], dn,
                              preferred_element_type=jnp.float32)
              + lax.dot_general(hb_ref[...], wb_ref[...], dn,
                                preferred_element_type=jnp.float32)
              + bout_ref[...])                                  # (ct, bt, V1P) f32
    out_ref[...] = logits.astype(out_ref.dtype)

    v1p = out_ref.shape[-1]
    lane = lax.broadcasted_iota(jnp.int32, logits.shape, 2)
    z = jnp.where(lane < v1, logits, -1e30)                     # mask vocab padding
    mx = jnp.max(z, axis=-1, keepdims=True)
    # max(log_softmax) == -log(sum(exp(x - max)));  argmax(log_softmax) == argmax(x)
    max_logp = -jnp.log(jnp.sum(jnp.exp(z - mx), axis=-1))      # (ct, bt)
    argmax = jnp.min(jnp.where(z == mx, lane, v1p), axis=-1)    # ties -> lowest index
    t_global = c * ct + lax.broadcasted_iota(jnp.int32, (ct, bt), 0)
    valid = jnp.logical_and(argmax != blank_id, t_global < t_orig)
    csum_s[...] += jnp.sum(jnp.where(valid, max_logp, 0.0), axis=0)[:, None]
    cnt_s[...] += jnp.sum(valid.astype(jnp.float32), axis=0)[:, None]
    conf_ref[...] = csum_s[...] / (cnt_s[...] * log_vocab + 1e-5)


def output_proj_conf(hf, hb, p, vocab, *, ct, t_orig):
    T_pad, B_pad, H = hf.shape
    v1p = p["bout"].shape[-1]
    bt = BATCH_TILE
    grid = (B_pad // bt, T_pad // ct)
    kernel = functools.partial(_proj_conf_kernel, blank_id=vocab, v1=vocab + 1,
                               log_vocab=float(math.log(vocab)), t_orig=t_orig)
    return pl.pallas_call(
        kernel,
        out_shape=(jax.ShapeDtypeStruct((T_pad, B_pad, v1p), jnp.bfloat16),
                   jax.ShapeDtypeStruct((B_pad, 1), jnp.float32)),
        grid=grid,
        in_specs=[
            pl.BlockSpec((ct, bt, H), lambda b, c: (c, b, 0)),
            pl.BlockSpec((ct, bt, H), lambda b, c: (c, b, 0)),
            pl.BlockSpec((H, v1p), lambda b, c: (0, 0)),
            pl.BlockSpec((H, v1p), lambda b, c: (0, 0)),
            pl.BlockSpec((1, v1p), lambda b, c: (0, 0)),
        ],
        out_specs=(pl.BlockSpec((ct, bt, v1p), lambda b, c: (c, b, 0)),
                   pl.BlockSpec((bt, 1), lambda b, c: (b, 0))),
        scratch_shapes=[pltpu.VMEM((bt, 1), jnp.float32),
                        pltpu.VMEM((bt, 1), jnp.float32)],
        compiler_params=pltpu.CompilerParams(
            dimension_semantics=("parallel", "arbitrary"),
            vmem_limit_bytes=64 * 1024 * 1024),
    )(hf, hb, p["wout_f"], p["wout_b"], p["bout"])


# ------------------------------- full forward --------------------------------
def wav2vec_muti_lang_model(wav, wav_lens, params, lang2vocab, lang2index,
                            sample_rate=16000, lang=None):
    # DataProcessor: identity at 16 kHz
    assert sample_rate == 16000

    # Wav2vecMutiModel feature extraction
    feature = featurize(wav, params["feat"])                   # (B, T, D) bf16
    B, T, _ = feature.shape

    max_len = jnp.max(wav_lens).astype(jnp.float32)
    percents = wav_lens.astype(jnp.float32) / max_len
    lengths = jnp.floor(percents * T).astype(jnp.int32)        # reference length math

    # pad batch to a sublane-full multiple of 8 and time to a chunk multiple
    ct = CHUNK_T if T >= CHUNK_T else T
    T_pad = _round_up(T, ct)
    B_pad = _round_up(B, BATCH_TILE)
    x_tm = jnp.transpose(feature, (1, 0, 2))                   # (T, B, D) time-major
    x_tm = jnp.pad(x_tm, ((0, T_pad - T), (0, B_pad - B), (0, 0)))
    len_pad = jnp.zeros((B_pad, 1), jnp.int32).at[:B, 0].set(lengths)

    res = {}
    confs = {}
    langs = [lang] if lang is not None else list(lang2vocab.keys())
    for key in langs:
        hp = params["heads"][key]
        v1 = lang2vocab[key] + 1
        hf, hb = lstm_recurrence(x_tm, len_pad, hp, ct=ct)
        logits_pad, conf = output_proj_conf(hf, hb, hp, lang2vocab[key],
                                            ct=ct, t_orig=T)
        # (T_pad, B_pad, V1P) bf16 -> batch-first, un-padded (B, T, V1)
        res[key] = jnp.transpose(logits_pad, (1, 0, 2))[:B, :T, :v1]
        confs[key] = conf[:B, 0]                               # (B,)
    if lang is not None:
        return res, (None, None)

    # LangDiscriminator: confidences computed in-kernel; tiny MLP in plain XLA
    classes = len(lang2vocab)
    ordered = [None] * classes
    for key in lang2vocab:
        ordered[lang2index[key]] = confs[key]
    res_tensor = jnp.stack(ordered, axis=1)                    # (B, classes)

    d = params["disc"]
    h = jax.nn.relu(res_tensor @ d["w1"] + d["b1"])
    disc = h @ d["w2"] + d["b2"]
    return res, (res_tensor, disc)


# ----------------------------- deterministic init ----------------------------
def init_params(key, linear_dim, lang2vocab, hidden_dim):
    D = linear_dim
    H = D // 2
    classes = len(lang2vocab)
    k_feat, k_heads, k_disc = jax.random.split(key, 3)

    def rnd(k, shape, scale=0.1):
        return scale * jax.random.normal(k, shape, jnp.float32)

    kf = jax.random.split(k_feat, 4)
    feat = {
        "wc": rnd(kf[0], (FRAME, D)).astype(jnp.bfloat16),
        "bc": rnd(kf[1], (1, D)),
        "wp": rnd(kf[2], (D, D)).astype(jnp.bfloat16),
        "bp": rnd(kf[3], (1, D)),
    }

    heads = {}
    head_keys = jax.random.split(k_heads, len(lang2vocab))
    for hk, (lang_key, vocab) in zip(head_keys, lang2vocab.items()):
        ks = jax.random.split(hk, 9)
        v1p = _round_up(vocab + 1, 128)        # lane-dense padded vocab width
        heads[lang_key] = {
            "wih_f": rnd(ks[0], (D, 4 * H)).astype(jnp.bfloat16),
            "whh_f": rnd(ks[1], (H, 4 * H)).astype(jnp.bfloat16),
            "b_f":   rnd(ks[2], (1, 4 * H)),   # b_ih + b_hh combined
            "wih_b": rnd(ks[3], (D, 4 * H)).astype(jnp.bfloat16),
            "whh_b": rnd(ks[4], (H, 4 * H)).astype(jnp.bfloat16),
            "b_b":   rnd(ks[5], (1, 4 * H)),
            "wout_f": rnd(ks[6], (H, v1p)).astype(jnp.bfloat16),
            "wout_b": rnd(ks[7], (H, v1p)).astype(jnp.bfloat16),
            "bout":   rnd(ks[8], (1, v1p)),
        }

    kd = jax.random.split(k_disc, 4)
    disc = {
        "w1": rnd(kd[0], (classes, hidden_dim)),
        "b1": rnd(kd[1], (1, hidden_dim)),
        "w2": rnd(kd[2], (hidden_dim, classes)),
        "b2": rnd(kd[3], (1, classes)),
    }
    return {"feat": feat, "heads": heads, "disc": disc}


if __name__ == "__main__":
    B = 2
    L = 64              # raw waveform samples (padded)
    linear_dim = 32     # feature / LSTM io dim (stand-in for 768)
    hidden_dim = 16     # discriminator hidden dim (stand-in for 128)
    lang2vocab = {"en": 11, "cn": 13}
    lang2index = {"en": 0, "cn": 1}

    key = jax.random.PRNGKey(0)
    k_wav, k_par = jax.random.split(key)

    wav = jax.random.normal(k_wav, (B, L), jnp.float32)
    wav_lens = jnp.array([L, 48], jnp.int32)
    # mimic pad_sequence: zero out the padded tail of the shorter utterance
    pos = jnp.arange(L)[None, :]
    wav = jnp.where(pos < wav_lens[:, None], wav, 0.0)

    params = init_params(k_par, linear_dim, lang2vocab, hidden_dim)

    res, (res_tensor, disc) = wav2vec_muti_lang_model(
        wav, wav_lens, params, lang2vocab, lang2index, sample_rate=16000, lang=None)

    jax.block_until_ready((res, res_tensor, disc))
    print("KERNEL_OK")
</pallas_src>

<mosaic_0001>
module attributes {stable_mosaic.version = 11 : i64} {
  func.func @_featurizer_kernel(%arg0: i32, %arg1: i32, %arg2: memref<1x8x8xbf16, #tpu.memory_space<vmem>>, %arg3: memref<8x32xbf16, #tpu.memory_space<vmem>>, %arg4: memref<1x32xf32, #tpu.memory_space<vmem>>, %arg5: memref<32x32xbf16, #tpu.memory_space<vmem>>, %arg6: memref<1x32xf32, #tpu.memory_space<vmem>>, %arg7: memref<1x8x32xbf16, #tpu.memory_space<vmem>>) attributes {dimension_semantics = [#tpu.dimension_semantics<parallel>, #tpu.dimension_semantics<parallel>], iteration_bounds = array<i64: 2, 1>, scalar_prefetch = 0 : i64, scratch_operands = 0 : i64, tpu.core_type = #tpu.core_type<tc>, window_params = [{transform_indices = @transform_0, window_bounds = array<i64: 1, 8, 8>}, {pipeline_mode = #tpu.pipeline_mode<synchronous>, transform_indices = @transform_1, window_bounds = array<i64: 8, 32>}, {pipeline_mode = #tpu.pipeline_mode<synchronous>, transform_indices = @transform_2, window_bounds = array<i64: 1, 32>}, {pipeline_mode = #tpu.pipeline_mode<synchronous>, transform_indices = @transform_3, window_bounds = array<i64: 32, 32>}, {pipeline_mode = #tpu.pipeline_mode<synchronous>, transform_indices = @transform_4, window_bounds = array<i64: 1, 32>}, {transform_indices = @transform_5, window_bounds = array<i64: 1, 8, 32>}]} {
    %c0 = arith.constant 0 : index
    %c0_0 = arith.constant 0 : index
    %c0_1 = arith.constant 0 : index
    %0 = vector.load %arg2[%c0, %c0_0, %c0_1] : memref<1x8x8xbf16, #tpu.memory_space<vmem>>, vector<1x8x8xbf16>
    %1 = vector.shape_cast %0 : vector<1x8x8xbf16> to vector<8x8xbf16>
    %c0_2 = arith.constant 0 : index
    %c0_3 = arith.constant 0 : index
    %2 = vector.load %arg3[%c0_2, %c0_3] : memref<8x32xbf16, #tpu.memory_space<vmem>>, vector<8x32xbf16>
    %cst = arith.constant dense<0.000000e+00> : vector<8x32xf32>
    %3 = tpu.matmul %1, %2, %cst {dimension_numbers = #tpu.dot_dimension_numbers<[1], [0], [0], [1], [0, 0, 1, 1], [], []>} : vector<8x8xbf16>, vector<8x32xbf16>, vector<8x32xf32> -> vector<8x32xf32>
    %c0_4 = arith.constant 0 : index
    %c0_5 = arith.constant 0 : index
    %4 = vector.load %arg4[%c0_4, %c0_5] : memref<1x32xf32, #tpu.memory_space<vmem>>, vector<1x32xf32>
    %5 = vector.broadcast %4 : vector<1x32xf32> to vector<8x32xf32>
    %6 = arith.addf %3, %5 : vector<8x32xf32>
    %7 = arith.mulf %6, %6 : vector<8x32xf32>
    %8 = arith.mulf %6, %7 : vector<8x32xf32>
    %cst_6 = arith.constant 4.471500e-02 : f32
    %9 = vector.broadcast %cst_6 : f32 to vector<8x32xf32>
    %10 = arith.mulf %9, %8 : vector<8x32xf32>
    %11 = arith.addf %6, %10 : vector<8x32xf32>
    %cst_7 = arith.constant 0.797884583 : f32
    %12 = vector.broadcast %cst_7 : f32 to vector<8x32xf32>
    %13 = arith.mulf %12, %11 : vector<8x32xf32>
    %14 = math.tanh %13 : vector<8x32xf32>
    %cst_8 = arith.constant 1.000000e+00 : f32
    %15 = vector.broadcast %cst_8 : f32 to vector<8x32xf32>
    %16 = arith.addf %15, %14 : vector<8x32xf32>
    %cst_9 = arith.constant 5.000000e-01 : f32
    %17 = vector.broadcast %cst_9 : f32 to vector<8x32xf32>
    %18 = arith.mulf %17, %16 : vector<8x32xf32>
    %19 = arith.mulf %6, %18 : vector<8x32xf32>
    %20 = arith.truncf %19 : vector<8x32xf32> to vector<8x32xbf16>
    %c0_10 = arith.constant 0 : index
    %c0_11 = arith.constant 0 : index
    %21 = vector.load %arg5[%c0_10, %c0_11] : memref<32x32xbf16, #tpu.memory_space<vmem>>, vector<32x32xbf16>
    %cst_12 = arith.constant dense<0.000000e+00> : vector<8x32xf32>
    %22 = tpu.matmul %20, %21, %cst_12 {dimension_numbers = #tpu.dot_dimension_numbers<[1], [0], [0], [1], [0, 0, 1, 1], [], []>} : vector<8x32xbf16>, vector<32x32xbf16>, vector<8x32xf32> -> vector<8x32xf32>
    %c0_13 = arith.constant 0 : index
    %c0_14 = arith.constant 0 : index
    %23 = vector.load %arg6[%c0_13, %c0_14] : memref<1x32xf32, #tpu.memory_space<vmem>>, vector<1x32xf32>
    %24 = vector.broadcast %23 : vector<1x32xf32> to vector<8x32xf32>
    %25 = arith.addf %22, %24 : vector<8x32xf32>
    %26 = arith.truncf %25 : vector<8x32xf32> to vector<8x32xbf16>
    %c0_15 = arith.constant 0 : index
    %c0_16 = arith.constant 0 : index
    %c0_17 = arith.constant 0 : index
    %27 = vector.load %arg7[%c0_15, %c0_16, %c0_17] : memref<1x8x32xbf16, #tpu.memory_space<vmem>>, vector<1x8x32xbf16>
    %28 = vector.shape_cast %27 : vector<1x8x32xbf16> to vector<8x32xbf16>
    %29 = vector.shape_cast %26 : vector<8x32xbf16> to vector<1x8x32xbf16>
    tpu.vector_store %arg7[%c0_15, %c0_16, %c0_17], %29 {strides = array<i32>} : memref<1x8x32xbf16, #tpu.memory_space<vmem>>, vector<1x8x32xbf16>,
    return
  }
  func.func @transform_0(%arg0: i32, %arg1: i32) -> (i32, i32, i32) {
    %c0_i32 = arith.constant 0 : i32
    %c0_i32_0 = arith.constant 0 : i32
    return %arg0, %arg1, %c0_i32 : i32, i32, i32
  }
  func.func @transform_1(%arg0: i32, %arg1: i32) -> (i32, i32) {
    %c0_i32 = arith.constant 0 : i32
    %c0_i32_0 = arith.constant 0 : i32
    %c0_i32_1 = arith.constant 0 : i32
    return %c0_i32, %c0_i32_0 : i32, i32
  }
  func.func @transform_2(%arg0: i32, %arg1: i32) -> (i32, i32) {
    %c0_i32 = arith.constant 0 : i32
    %c0_i32_0 = arith.constant 0 : i32
    %c0_i32_1 = arith.constant 0 : i32
    return %c0_i32, %c0_i32_0 : i32, i32
  }
  func.func @transform_3(%arg0: i32, %arg1: i32) -> (i32, i32) {
    %c0_i32 = arith.constant 0 : i32
    %c0_i32_0 = arith.constant 0 : i32
    %c0_i32_1 = arith.constant 0 : i32
    return %c0_i32, %c0_i32_0 : i32, i32
  }
  func.func @transform_4(%arg0: i32, %arg1: i32) -> (i32, i32) {
    %c0_i32 = arith.constant 0 : i32
    %c0_i32_0 = arith.constant 0 : i32
    %c0_i32_1 = arith.constant 0 : i32
    return %c0_i32, %c0_i32_0 : i32, i32
  }
  func.func @transform_5(%arg0: i32, %arg1: i32) -> (i32, i32, i32) {
    %c0_i32 = arith.constant 0 : i32
    %c0_i32_0 = arith.constant 0 : i32
    return %arg0, %arg1, %c0_i32 : i32, i32, i32
  }
}

</mosaic_0001>

<llo_original>
// kernel: tpu_custom_call.1
$region0: #{tpu_custom_call.1}
  #allocation0 [shape = 'u32[]', space=smem, size = 0x4, offset = 0x4, fixed_abs, tag = 'smem constant byte address 0x4 - core index']
  #allocation1 [shape = 'u32[144,128]{1,0:T(1,128)}', space=vmem, size = 0x12000, scoped, tag = 'internal scratch']
  %s0 = inlined_call_operand.hbm [shape: bf16[2,8,8], index: 0, kind: input, shape index: {}]
  %s1 = inlined_call_operand.hbm [shape: bf16[8,32], index: 1, kind: input, shape index: {}]
  %s2 = inlined_call_operand.vmem [shape: f32[1,32], index: 2, kind: input, shape index: {}]
  %s3 = inlined_call_operand.hbm [shape: bf16[32,32], index: 3, kind: input, shape index: {}]
  %s4 = inlined_call_operand.vmem [shape: f32[1,32], index: 4, kind: input, shape index: {}]
  %s5 = inlined_call_operand.hbm [shape: bf16[2,8,32], index: 5, kind: output, shape index: {}]
  %s6 = sld [smem:[#allocation0]]
  $region65: #{tpu_custom_call.1} parent=0
    _
  %s8 = ssub.s32 1, %s6
  %s9 = scalar_select 0, %s8, %s6
  $region1: #{tpu_custom_call.1} parent=0
    #allocation2 [shape = 'u8[4096]{0}', space=vmem, size = 0x1000, scoped, tag = 'input window, operand 0']
    #allocation3 [shape = 's32[2]{0}', space=sflag, size = 0x8, scoped, tag = 'scoped memory for tpu_custom_call.1']
    #allocation4 [shape = 's32[2]{0}', space=sflag, size = 0x8, scoped, tag = 'scoped memory for tpu_custom_call.1']
    #allocation5 [shape = 'u8[2048]{0}', space=vmem, size = 0x800, scoped, tag = 'input window, operand 1, single buffered']
    #allocation6 [shape = 's32[1]{0}', space=sflag, size = 0x4, scoped, tag = 'scoped memory for tpu_custom_call.1']
    #allocation7 [shape = 'u8[8192]{0}', space=vmem, size = 0x2000, scoped, tag = 'input window, operand 3, single buffered']
    #allocation8 [shape = 'u8[4096]{0}', space=vmem, size = 0x1000, scoped, tag = 'output window, operand 0']
    %10 = vsyncpa [#allocation3], 0
    %s11 = scalar_lea.sflag [#allocation3], 1
    %12 = vsyncpa %s11, 0
    %13 = vsyncpa [#allocation6], 0
    %14 = vsyncpa [#allocation4], 0
    %s15 = scalar_lea.sflag [#allocation4], 1
    %16 = vsyncpa %s15, 0
    loop: start=0, step=1, limit=4
    $region2: #{tpu_custom_call.1} parent=1 // loop_pre_header
      _
    $region3: #{tpu_custom_call.1} parent=1 // loop_header
      %s18 = sphi 0, %s22
      %p19 = scmp.ge.s32.totalorder %s18, 4
      %s25 = sphi 0, %s37
      %s26 = sphi 0, %s33
      %s27 = sphi 0, %s25
      %s28 = sphi 0, %s26
      %s29 = sphi 0, %s27
      %s30 = sphi 0, %s28
      %s42 = sphi 0, %s44
      %s45 = sphi 0, %s42
      %s46 = sphi 0, %s45
      %s62 = sphi 0, %s46
      %s66 = sphi 0, %s66
      %s68 = sphi 0, %s66
      %s69 = sphi 0, %s68
      %s83 = sphi 0, %s69
      %s87 = sphi 0, %s87
      %s89 = sphi 0, %s87
      %s90 = sphi 0, %s89
      %s104 = sphi 0, %s90
      %s108 = sphi 0, %s108
      %s110 = sphi 0, %s108
      %s111 = sphi 0, %s110
      %s125 = sphi 0, %s111
      %s129 = sphi 0, %s129
      %s131 = sphi 0, %s129
      %s132 = sphi 0, %s131
      %s146 = sphi 0, %s132
      %s154 = sphi 0, %s156
      %s157 = sphi 0, %s154
      %s158 = sphi 0, %s157
      %s174 = sphi 0, %s158
    $region4: #{tpu_custom_call.1} parent=1 // loop_header_branch
      %21 = sbr.rel (%p19) target = $region8
    $region5: #{tpu_custom_call.1} parent=1 // loop_body
      %s23 = ssub.s32 %s18, 1
      %s24 = ssub.s32 %s18, 2
      %s31 = sadd.s32 1, %s26
      %p32 = scmp.ge.s32.totalorder %s31, 1
      %s33 = scalar_select %p32, 0, %s31
      %s34 = sadd.s32 1, %s25
      %s35 = scalar_select %p32, %s34, %s25
      %p36 = scmp.ge.s32.totalorder %s35, 2
      %s37 = scalar_select %p36, 0, %s35
      %s38 = ssub.s32 %s25, %s37
      %s39 = ssub.s32 %s26, %s33
      %s40 = sor.u32 %s38, %s39
      %p41 = scmp.eq.s32.totalorder %s40, 0
      %s43 = sadd.s32 %s42, 1
      %s44 = scalar_select %p41, %s42, %s43
      %p47 = pneg %p41
      %p48 = scmp.eq.s32.totalorder %s18, 1
      %p49 = por %p47, %p48
      %p50 = scmp.ne.s32.totalorder %s42, %s45
      %p51 = scmp.eq.s32.totalorder %s18, 0
      %p52 = por %p50, %p51
      %p53 = scmp.ne.s32.totalorder %s42, %s45
      %p54 = scmp.eq.s32.totalorder %s23, 1
      %p55 = por %p53, %p54
      %p56 = scmp.ne.s32.totalorder %s45, %s46
      %p57 = scmp.eq.s32.totalorder %s23, 0
      %p58 = por %p56, %p57
      %p59 = scmp.ne.s32.totalorder %s45, %s46
      %p60 = scmp.eq.s32.totalorder %s24, 1
      %p61 = por %p59, %p60
      %p63 = scmp.ne.s32.totalorder %s46, %s62
      %p64 = scmp.eq.s32.totalorder %s24, 0
      %p65 = por %p63, %p64
      %s67 = sadd.s32 %s66, 1
      %p70 = scmp.eq.s32.totalorder %s18, 1
      %p71 = scmp.ne.s32.totalorder %s66, %s68
      %p72 = scmp.eq.s32.totalorder %s18, 0
      %p73 = por %p71, %p72
      %p74 = scmp.ne.s32.totalorder %s66, %s68
      %p75 = scmp.eq.s32.totalorder %s23, 1
      %p76 = por %p74, %p75
      %p77 = scmp.ne.s32.totalorder %s68, %s69
      %p78 = scmp.eq.s32.totalorder %s23, 0
      %p79 = por %p77, %p78
      %p80 = scmp.ne.s32.totalorder %s68, %s69
      %p81 = scmp.eq.s32.totalorder %s24, 1
      %p82 = por %p80, %p81
      %p84 = scmp.ne.s32.totalorder %s69, %s83
      %p85 = scmp.eq.s32.totalorder %s24, 0
      %p86 = por %p84, %p85
      %s88 = sadd.s32 %s87, 1
      %p91 = scmp.eq.s32.totalorder %s18, 1
      %p92 = scmp.ne.s32.totalorder %s87, %s89
      %p93 = scmp.eq.s32.totalorder %s18, 0
      %p94 = por %p92, %p93
      %p95 = scmp.ne.s32.totalorder %s87, %s89
      %p96 = scmp.eq.s32.totalorder %s23, 1
      %p97 = por %p95, %p96
      %p98 = scmp.ne.s32.totalorder %s89, %s90
      %p99 = scmp.eq.s32.totalorder %s23, 0
      %p100 = por %p98, %p99
      %p101 = scmp.ne.s32.totalorder %s89, %s90
      %p102 = scmp.eq.s32.totalorder %s24, 1
      %p103 = por %p101, %p102
      %p105 = scmp.ne.s32.totalorder %s90, %s104
      %p106 = scmp.eq.s32.totalorder %s24, 0
      %p107 = por %p105, %p106
      %s109 = sadd.s32 %s108, 1
      %p112 = scmp.eq.s32.totalorder %s18, 1
      %p113 = scmp.ne.s32.totalorder %s108, %s110
      %p114 = scmp.eq.s32.totalorder %s18, 0
      %p115 = por %p113, %p114
      %p116 = scmp.ne.s32.totalorder %s108, %s110
      %p117 = scmp.eq.s32.totalorder %s23, 1
      %p118 = por %p116, %p117
      %p119 = scmp.ne.s32.totalorder %s110, %s111
      %p120 = scmp.eq.s32.totalorder %s23, 0
      %p121 = por %p119, %p120
      %p122 = scmp.ne.s32.totalorder %s110, %s111
      %p123 = scmp.eq.s32.totalorder %s24, 1
      %p124 = por %p122, %p123
      %p126 = scmp.ne.s32.totalorder %s111, %s125
      %p127 = scmp.eq.s32.totalorder %s24, 0
      %p128 = por %p126, %p127
      %s130 = sadd.s32 %s129, 1
      %p133 = scmp.eq.s32.totalorder %s18, 1
      %p134 = scmp.ne.s32.totalorder %s129, %s131
      %p135 = scmp.eq.s32.totalorder %s18, 0
      %p136 = por %p134, %p135
      %p137 = scmp.ne.s32.totalorder %s129, %s131
      %p138 = scmp.eq.s32.totalorder %s23, 1
      %p139 = por %p137, %p138
      %p140 = scmp.ne.s32.totalorder %s131, %s132
      %p141 = scmp.eq.s32.totalorder %s23, 0
      %p142 = por %p140, %p141
      %p143 = scmp.ne.s32.totalorder %s131, %s132
      %p144 = scmp.eq.s32.totalorder %s24, 1
      %p145 = por %p143, %p144
      %p147 = scmp.ne.s32.totalorder %s132, %s146
      %p148 = scmp.eq.s32.totalorder %s24, 0
      %p149 = por %p147, %p148
      %s150 = ssub.s32 %s25, %s37
      %s151 = ssub.s32 %s26, %s33
      %s152 = sor.u32 %s150, %s151
      %p153 = scmp.eq.s32.totalorder %s152, 0
      %s155 = sadd.s32 %s154, 1
      %s156 = scalar_select %p153, %s154, %s155
      %p159 = pneg %p153
      %p160 = scmp.eq.s32.totalorder %s18, 1
      %p161 = por %p159, %p160
      %p162 = scmp.ne.s32.totalorder %s154, %s157
      %p163 = scmp.eq.s32.totalorder %s18, 0
      %p164 = por %p162, %p163
      %p165 = scmp.ne.s32.totalorder %s154, %s157
      %p166 = scmp.eq.s32.totalorder %s23, 1
      %p167 = por %p165, %p166
      %p168 = scmp.ne.s32.totalorder %s157, %s158
      %p169 = scmp.eq.s32.totalorder %s23, 0
      %p170 = por %p168, %p169
      %p171 = scmp.ne.s32.totalorder %s157, %s158
      %p172 = scmp.eq.s32.totalorder %s24, 1
      %p173 = por %p171, %p172
      %p175 = scmp.ne.s32.totalorder %s158, %s174
      %p176 = scmp.eq.s32.totalorder %s24, 0
      %p177 = por %p175, %p176
      %p178 = scmp.le.s32.totalorder 1, %s18
      %p179 = scmp.lt.s32.totalorder %s18, 3
      %p180 = pnand %p178, %p179
      %p181 = pneg %p180
      // Predicated region
      $region9: #{tpu_custom_call.1} parent=5 // pred_check
        _
      $region10: #{tpu_custom_call.1} parent=5 // pred_check_branch
        %183 = sbr.rel (%p180) target = $region12
      $region11: #{tpu_custom_call.1} parent=5 // pred_region
        %s184 = ssub.s32 %s18, 1
        // Predicated region
        $region13: #{tpu_custom_call.1} parent=11 // pred_check
          %p185 = pneg %p79
        $region14: #{tpu_custom_call.1} parent=11 // pred_check_branch
          %187 = sbr.rel (%p185) target = $region16
        $region15: #{tpu_custom_call.1} parent=11 // pred_region
          %s189 = ssub.s32 64, 64
          %190 = vsyncadd [#allocation6], %s189
          %s192 = sshll.u32 [#allocation5], 4
          %s193 = int_to_ptr.vmem [resolvable:$true] %s192
          %195 = dma.hbm_to_vmem [thread:$0]  %s1, 64, %s193, [#allocation6]
        $region16: #{tpu_custom_call.1} parent=11 // pred_fallthru
          _
        // Predicated region
        $region17: #{tpu_custom_call.1} parent=11 // pred_check
          %p196 = pneg %p100
        $region18: #{tpu_custom_call.1} parent=11 // pred_check_branch
          %198 = sbr.rel (%p196) target = $region20
        $region19: #{tpu_custom_call.1} parent=11 // pred_region
          _
        $region20: #{tpu_custom_call.1} parent=11 // pred_fallthru
          _
        // Predicated region
        $region21: #{tpu_custom_call.1} parent=11 // pred_check
          %p199 = pneg %p121
        $region22: #{tpu_custom_call.1} parent=11 // pred_check_branch
          %201 = sbr.rel (%p199) target = $region24
        $region23: #{tpu_custom_call.1} parent=11 // pred_region
          %s203 = ssub.s32 256, 256
          %204 = vsyncadd [#allocation6], %s203
          %s205 = sshll.u32 [#allocation7], 4
          %s206 = int_to_ptr.vmem [resolvable:$true] %s205
          %211 = dma.hbm_to_vmem [thread:$0]  %s3, 256, %s206, [#allocation6], 64, 64, 4
        $region24: #{tpu_custom_call.1} parent=11 // pred_fallthru
          _
        // Predicated region
        $region25: #{tpu_custom_call.1} parent=11 // pred_check
          %p212 = pneg %p142
        $region26: #{tpu_custom_call.1} parent=11 // pred_check_branch
          %214 = sbr.rel (%p212) target = $region28
        $region27: #{tpu_custom_call.1} parent=11 // pred_region
          _
        $region28: #{tpu_custom_call.1} parent=11 // pred_fallthru
          _
      $region12: #{tpu_custom_call.1} parent=5 // pred_fallthru
        _
      %p215 = scmp.lt.s32.totalorder %s18, 2
      // Predicated region
      $region29: #{tpu_custom_call.1} parent=5 // pred_check
        %p216 = pneg %p215
      $region30: #{tpu_custom_call.1} parent=5 // pred_check_branch
        %218 = sbr.rel (%p216) target = $region32
      $region31: #{tpu_custom_call.1} parent=5 // pred_region
        // Predicated region
        $region33: #{tpu_custom_call.1} parent=31 // pred_check
          %p219 = pneg %p52
        $region34: #{tpu_custom_call.1} parent=31 // pred_check_branch
          %221 = sbr.rel (%p219) target = $region36
        $region35: #{tpu_custom_call.1} parent=31 // pred_region
          %s222 = sand.u32 %s42, 1
          %s223 = scalar_lea.sflag [#allocation3], %s222
          %s224 = sand.u32 %s42, 1
          %s225 = smul.addr %s224, 4
          %s226 = scalar_lea.vmem [#allocation2], %s225
          %s228 = ssub.s32 64, 64
          %229 = vsyncadd %s223, %s228
          %s230 = sadd.s32 %s26, %s25
          %s231 = smul.addr %s230, 64
          %s232 = scalar_lea.hbm %s0, %s231
          %s234 = sshll.u32 %s226, 4
          %s235 = int_to_ptr.vmem [resolvable:$true] %s234
          %237 = dma.hbm_to_vmem [thread:$0]  %s232, 64, %s235, %s223
        $region36: #{tpu_custom_call.1} parent=31 // pred_fallthru
          _
      $region32: #{tpu_custom_call.1} parent=5 // pred_fallthru
        _
      %p238 = scmp.le.s32.totalorder 1, %s18
      %p239 = scmp.lt.s32.totalorder %s18, 3
      %p240 = pnand %p238, %p239
      %p241 = pneg %p240
      // Predicated region
      $region37: #{tpu_custom_call.1} parent=5 // pred_check
        _
      $region38: #{tpu_custom_call.1} parent=5 // pred_check_branch
        %243 = sbr.rel (%p240) target = $region40
      $region39: #{tpu_custom_call.1} parent=5 // pred_region
        %s244 = ssub.s32 %s18, 1
        %s245 = sand.u32 %s45, 1
        %s246 = scalar_lea.sflag [#allocation3], %s245
        %s247 = sand.u32 %s45, 1
        %s248 = smul.addr %s247, 4
        %s249 = scalar_lea.vmem [#allocation2], %s248
        // Predicated region
        $region41: #{tpu_custom_call.1} parent=39 // pred_check
          %p250 = pneg %p58
        $region42: #{tpu_custom_call.1} parent=39 // pred_check_branch
          %252 = sbr.rel (%p250) target = $region44
        $region43: #{tpu_custom_call.1} parent=39 // pred_region
          %253 = dma.done %s246, 64
        $region44: #{tpu_custom_call.1} parent=39 // pred_fallthru
          _
        // Predicated region
        $region45: #{tpu_custom_call.1} parent=39 // pred_check
          %p254 = pneg %p79
        $region46: #{tpu_custom_call.1} parent=39 // pred_check_branch
          %256 = sbr.rel (%p254) target = $region48
        $region47: #{tpu_custom_call.1} parent=39 // pred_region
          %257 = dma.done [#allocation6], 64
        $region48: #{tpu_custom_call.1} parent=39 // pred_fallthru
          _
        // Predicated region
        $region49: #{tpu_custom_call.1} parent=39 // pred_check
          %p258 = pneg %p121
        $region50: #{tpu_custom_call.1} parent=39 // pred_check_branch
          %260 = sbr.rel (%p258) target = $region52
        $region51: #{tpu_custom_call.1} parent=39 // pred_region
          %261 = dma.done [#allocation6], 256
        $region52: #{tpu_custom_call.1} parent=39 // pred_fallthru
          _
        %s262 = sand.u32 %s45, 1
        %s263 = scalar_lea.sflag [#allocation3], %s262
        %s264 = sand.u32 %s45, 1
        %s265 = smul.addr %s264, 4
        %s266 = scalar_lea.vmem [#allocation2], %s265
        %p267 = pneg %p58
        %p268 = pneg %p55
        %p269 = pneg %p79
        %p270 = pneg %p76
        %p271 = pneg %p100
        %p272 = pneg %p97
        %p273 = pneg %p121
        %p274 = pneg %p118
        %p275 = pneg %p142
        %p276 = pneg %p139
        %p277 = pneg %p170
        %p278 = pneg %p167
        %s279 = sand.u32 %s157, 1
        %s280 = scalar_lea.sflag [#allocation4], %s279
        %s281 = sand.u32 %s157, 1
        %s282 = smul.addr %s281, 4
        %s283 = scalar_lea.vmem [#allocation8], %s282
        %v285 = vld [vmem:[%s249] sm:$0xf]
        %v286 = vld [vmem:[#allocation5] sm:$0xf]
        %v287 = vld [vmem:[%s2] sm:$0x1]
        %v289 = vlaneseq
        %v290 = vshrl.u32 %v289, 7
        %v291 = vsub.s32 0, %v290
        %v292 = vrot.slane %v287, %v291
        %vm294 = vcmask 64512
        %v296 = vsel %vm294, %v285, 0
        %vm298 = vcmask 1043456
        %v300 = vsel %vm298, %v286, 0
        %302 = vmatprep.subr.bf16.mxu0 0
        %303 = vmatpush1.bf16.msra.mxu0 %v300
        %304 = vmatprep.subr.bf16.mxu0 0
        %305 = vmatpush1.bf16.msra.mxu0 0
        %306 = vmatprep.subr.bf16.mxu0 0
        %307 = vmatpush1.bf16.msra.mxu0 0
        %308 = vmatprep.subr.bf16.mxu0 0
        %309 = vmatpush1.bf16.msra.mxu0 0
        %310 = vmatprep.subr.bf16.mxu0 0
        %311 = vmatpush1.bf16.msra.mxu0 0
        %312 = vmatprep.subr.bf16.mxu0 0
        %313 = vmatpush1.bf16.msra.mxu0 0
        %314 = vmatprep.subr.bf16.mxu0 0
        %315 = vmatpush1.bf16.msra.mxu0 0
        %316 = vmatprep.subr.bf16.mxu0 0
        %317 = vmatpush1.bf16.msra.mxu0 0
        %318 = vmatprep.subr.bf16.mxu0 0
        %319 = vmatpush1.bf16.msra.mxu0 0
        %320 = vmatprep.subr.bf16.mxu0 0
        %321 = vmatpush1.bf16.msra.mxu0 0
        %322 = vmatprep.subr.bf16.mxu0 0
        %323 = vmatpush1.bf16.msra.mxu0 0
        %324 = vmatprep.subr.bf16.mxu0 0
        %325 = vmatpush1.bf16.msra.mxu0 0
        %326 = vmatprep.subr.bf16.mxu0 0
        %327 = vmatpush1.bf16.msra.mxu0 0
        %328 = vmatprep.subr.bf16.mxu0 0
        %329 = vmatpush1.bf16.msra.mxu0 0
        %330 = vmatprep.subr.bf16.mxu0 0
        %331 = vmatpush1.bf16.msra.mxu0 0
        %332 = vmatprep.subr.bf16.mxu0 0
        %333 = vmatpush1.bf16.msra.mxu0 0
        %334 = vmatprep.mubr.bf16.mxu0 0
        %335 = vmatmul.mubr.bf16.gmra.mrb[0].mxu0 %v296
        %v336 = vpop.f32.mrb[0].mxu0
        %v337 = vadd.f32 %v292, %v336
        %v338 = vpop.f32.mrb[0].mxu0
        %v339 = vpop.f32.mrb[0].mxu0
        %v340 = vpop.f32.mrb[0].mxu0
        %341 = vdwg.mxu0
        %v342 = vmul.f32 %v337, %v337
        %v343 = vmul.f32 %v337, %v342
        %v344 = vmul.f32 %v343, 0.044715
        %v345 = vadd.f32 %v337, %v344
        %v346 = vmul.f32 %v345, 0.7978846
        %v347 = vtanh.pop %v346
        %v348 = vadd.f32 %v347, 1.0
        %v349 = vmul.f32 %v348, 0.5
        %v350 = vmul.f32 %v337, %v349
        %v351 = vpack.c.bf16 %v350, %v350
        %v352 = vld [vmem:[#allocation7] sm:$0xf]
        %v353 = vld [vmem:[#allocation7 + $0x4] sm:$0xf]
        %v354 = vld [vmem:[#allocation7 + $0x8] sm:$0xf]
        %v355 = vld [vmem:[#allocation7 + $0xc] sm:$0xf]
        %v356 = vld [vmem:[%s4] sm:$0x1]
        %v358 = vlaneseq
        %v359 = vshrl.u32 %v358, 7
        %v360 = vsub.s32 0, %v359
        %v361 = vrot.slane %v356, %v360
        %v367 = vunpack.c.l.b16 %v352
        %v368 = vunpack.c.l.b16 %v353
        %v369 = vunpack.c.l.b16 %v354
        %v370 = vunpack.c.l.b16 %v355
        %v371 = vpack.c.b16 %v368, %v367
        %v372 = vpack.c.b16 %v370, %v369
        %vm375 = vcmask 261120
        %v377 = vsel %vm375, %v351, 0
        %379 = vmatprep.subr.bf16.mxu0 0
        %380 = vmatpush1.bf16.msra.mxu0 %v371
        %381 = vmatprep.subr.bf16.mxu0 0
        %382 = vmatpush1.bf16.msra.mxu0 %v372
        %383 = vmatprep.subr.bf16.mxu0 0
        %384 = vmatpush1.bf16.msra.mxu0 0
        %385 = vmatprep.subr.bf16.mxu0 0
        %386 = vmatpush1.bf16.msra.mxu0 0
        %387 = vmatprep.subr.bf16.mxu0 0
        %388 = vmatpush1.bf16.msra.mxu0 0
        %389 = vmatprep.subr.bf16.mxu0 0
        %390 = vmatpush1.bf16.msra.mxu0 0
        %391 = vmatprep.subr.bf16.mxu0 0
        %392 = vmatpush1.bf16.msra.mxu0 0
        %393 = vmatprep.subr.bf16.mxu0 0
        %394 = vmatpush1.bf16.msra.mxu0 0
        %395 = vmatprep.subr.bf16.mxu0 0
        %396 = vmatpush1.bf16.msra.mxu0 0
        %397 = vmatprep.subr.bf16.mxu0 0
        %398 = vmatpush1.bf16.msra.mxu0 0
        %399 = vmatprep.subr.bf16.mxu0 0
        %400 = vmatpush1.bf16.msra.mxu0 0
        %401 = vmatprep.subr.bf16.mxu0 0
        %402 = vmatpush1.bf16.msra.mxu0 0
        %403 = vmatprep.subr.bf16.mxu0 0
        %404 = vmatpush1.bf16.msra.mxu0 0
        %405 = vmatprep.subr.bf16.mxu0 0
        %406 = vmatpush1.bf16.msra.mxu0 0
        %407 = vmatprep.subr.bf16.mxu0 0
        %408 = vmatpush1.bf16.msra.mxu0 0
        %409 = vmatprep.subr.bf16.mxu0 0
        %410 = vmatpush1.bf16.msra.mxu0 0
        %411 = vmatprep.mubr.bf16.mxu0 0
        %412 = vmatmul.mubr.bf16.gmra.mrb[0].mxu0 %v377
        %v413 = vpop.f32.mrb[0].mxu0
        %v414 = vadd.f32 %v361, %v413
        %v415 = vpop.f32.mrb[0].mxu0
        %v416 = vpop.f32.mrb[0].mxu0
        %v417 = vpop.f32.mrb[0].mxu0
        %418 = vdwg.mxu0
        %v419 = vpack.c.bf16 %v414, %v414
        %vm420 = vcmask 257024
        %421 = vst.msk [vmem:[%s283] sm:$0xf] %vm420, %v419
        %s422 = sand.u32 %s157, 1
        %s423 = scalar_lea.sflag [#allocation4], %s422
        %s424 = sand.u32 %s157, 1
        %s425 = smul.addr %s424, 4
        %s426 = scalar_lea.vmem [#allocation8], %s425
        // Predicated region
        $region53: #{tpu_custom_call.1} parent=39 // pred_check
          %p427 = pneg %p167
        $region54: #{tpu_custom_call.1} parent=39 // pred_check_branch
          %429 = sbr.rel (%p427) target = $region56
        $region55: #{tpu_custom_call.1} parent=39 // pred_region
          %s431 = ssub.s32 64, 64
          %432 = vsyncadd %s423, %s431
          %s433 = sadd.s32 %s28, %s27
          %s434 = smul.addr %s433, 64
          %s435 = scalar_lea.hbm %s5, %s434
          %s437 = sshll.u32 %s426, 4
          %s438 = int_to_ptr.vmem [resolvable:$true] %s437
          %440 = dma.vmem_to_hbm [thread:$0]  %s438, 64, %s435, %s423
        $region56: #{tpu_custom_call.1} parent=39 // pred_fallthru
          _
      $region40: #{tpu_custom_call.1} parent=5 // pred_fallthru
        _
      %p441 = scmp.le.s32.totalorder 2, %s18
      // Predicated region
      $region57: #{tpu_custom_call.1} parent=5 // pred_check
        %p442 = pneg %p441
      $region58: #{tpu_custom_call.1} parent=5 // pred_check_branch
        %444 = sbr.rel (%p442) target = $region60
      $region59: #{tpu_custom_call.1} parent=5 // pred_region
        %s445 = ssub.s32 %s18, 2
        // Predicated region
        $region61: #{tpu_custom_call.1} parent=59 // pred_check
          %p446 = pneg %p173
        $region62: #{tpu_custom_call.1} parent=59 // pred_check_branch
          %448 = sbr.rel (%p446) target = $region64
        $region63: #{tpu_custom_call.1} parent=59 // pred_region
          %s449 = sand.u32 %s158, 1
          %s450 = scalar_lea.sflag [#allocation4], %s449
          %s451 = sand.u32 %s158, 1
          %s452 = smul.addr %s451, 4
          %s453 = scalar_lea.vmem [#allocation8], %s452
          %454 = dma.done %s450, 64
        $region64: #{tpu_custom_call.1} parent=59 // pred_fallthru
          _
      $region60: #{tpu_custom_call.1} parent=5 // pred_fallthru
        _
    $region6: #{tpu_custom_call.1} parent=1 // loop_footer
      %s22 = sadd.s32 1, %s18
    $region7: #{tpu_custom_call.1} parent=1 // loop_footer_branch
      %17 = sbr.rel target = $region3
    $region8: #{tpu_custom_call.1} parent=1 // loop_exit
      _
    %455 = vsyncpa [#allocation3], 1
    %s456 = scalar_lea.sflag [#allocation3], 1
    %457 = vsyncpa %s456, 1
    %458 = vsyncpa [#allocation6], 1
    %459 = vsyncpa [#allocation4], 1
    %s460 = scalar_lea.sflag [#allocation4], 1
    %461 = vsyncpa %s460, 1

</llo_original>
